<compile_context>
chip_gen: v7x
topology: tpu7x:2x2x1
jax: 0.10.0
libtpu: 0.0.40
codegen_flags: <defaults>
</compile_context>

<pallas_src>
import jax
import jax.numpy as jnp
from jax.experimental import pallas as pl
from jax.experimental.pallas import tpu as pltpu

LANE = 128


def _round_up(x, m):
    return ((x + m - 1) // m) * m


# ----------------------------------------------------------------------------
# Butterfly / global mask construction (deterministic, static, init-time only).
# ----------------------------------------------------------------------------
def butterfly_global_mask(out_f, in_f, stripes, window_size, block_size):
    rows = jnp.arange(out_f)[:, None]          # output index
    cols = jnp.arange(in_f)[None, :]           # input index

    # banded diagonal window (local connectivity)
    center = (rows * in_f) // out_f
    band = jnp.abs(cols - center) <= window_size

    # global stripes: evenly spaced input columns connected to every output
    stride = max(in_f // max(stripes, 1), 1)
    stripe = (cols % stride) == 0

    mask = band | stripe

    # optional block-diagonal blocks
    if block_size is not None:
        bo, bi = block_size
        block = (rows // bo) == (cols // bi)
        mask = mask | block

    return mask.astype(jnp.float32)            # (out_f, in_f)


def init_butterfly_linear(key, in_f, out_f, in_pad, out_pad, stripes,
                          window_size, block_size, pad_bias_value=0.0):
    """Masked linear layer, padded to MXU/lane-friendly shapes.

    Returns (Wt, b): Wt is (in_pad, out_pad) bf16 (already masked; padded rows/
    cols are zero so they are inert); b is (1, out_pad) f32 (padded entries set
    to `pad_bias_value`)."""
    kw, kb = jax.random.split(key)
    bound = 1.0 / jnp.sqrt(in_f)
    w = jax.random.uniform(kw, (out_f, in_f), jnp.float32, -bound, bound)
    b = jax.random.uniform(kb, (out_f,), jnp.float32, -bound, bound)
    mask = butterfly_global_mask(out_f, in_f, stripes, window_size, block_size)
    w = w * mask

    w_p = jnp.zeros((out_pad, in_pad), jnp.float32).at[:out_f, :in_f].set(w)
    b_p = jnp.full((out_pad,), pad_bias_value, jnp.float32).at[:out_f].set(b)
    return w_p.T.astype(jnp.bfloat16), b_p.reshape(1, out_pad)


def init_params(key, in_features, out_features=10):
    d0 = _round_up(in_features, LANE)          # e.g. 192 -> 256, 3072 -> 3072
    n1 = _round_up(392, LANE)                  # 392 -> 512
    n2 = 128                                   # already lane-aligned
    n3 = _round_up(64, LANE)                   # 64  -> 128
    n4 = _round_up(out_features, LANE)         # 10  -> 128

    k1, k2, k3, k4 = jax.random.split(key, 4)
    p1 = init_butterfly_linear(k1, in_features, 392, d0, n1,
                               stripes=5, window_size=6, block_size=(30, 30))
    p2 = init_butterfly_linear(k2, 392, 128, n1, n2,
                               stripes=4, window_size=4, block_size=(15, 15))
    p3 = init_butterfly_linear(k3, 128, 64, n2, n3,
                               stripes=4, window_size=4, block_size=(15, 15))
    # padded fake classes get a huge negative bias so log_softmax ignores them
    p4 = init_butterfly_linear(k4, 64, out_features, n3, n4,
                               stripes=2, window_size=3, block_size=None,
                               pad_bias_value=-1e30)
    return (p1, p2, p3, p4)


# ----------------------------------------------------------------------------
# Pallas kernel: fused 4-layer MLP with ReLU and log_softmax.
# bf16 matmul inputs, f32 accumulation / elementwise, lane-dense output block.
# ----------------------------------------------------------------------------
def mlp_kernel(x_ref, w1_ref, b1_ref, w2_ref, b2_ref, w3_ref, b3_ref,
               w4_ref, b4_ref, o_ref):
    h = jnp.dot(x_ref[...], w1_ref[...], preferred_element_type=jnp.float32)
    h = jnp.maximum(h + b1_ref[...], 0.0)

    h = jnp.dot(h.astype(jnp.bfloat16), w2_ref[...],
                preferred_element_type=jnp.float32)
    h = jnp.maximum(h + b2_ref[...], 0.0)

    h = jnp.dot(h.astype(jnp.bfloat16), w3_ref[...],
                preferred_element_type=jnp.float32)
    h = jnp.maximum(h + b3_ref[...], 0.0)

    logits = jnp.dot(h.astype(jnp.bfloat16), w4_ref[...],
                     preferred_element_type=jnp.float32)
    logits = logits + b4_ref[...]

    # stable log_softmax along the class axis (padded classes have ~-1e30
    # logits, so they contribute 0 to the denominator and are sliced outside).
    m = jnp.max(logits, axis=-1, keepdims=True)
    shifted = logits - m
    lse = jnp.log(jnp.sum(jnp.exp(shifted), axis=-1, keepdims=True))
    o_ref[...] = shifted - lse


def butterfly_mlp_forward(x_nchw, params, out_features=10, tile_b=256):
    """x_nchw: (B, C, H, W) float32. Returns (B, out_features) log-probs."""
    B = x_nchw.shape[0]
    (w1, b1), (w2, b2), (w3, b3), (w4, b4) = params
    d0 = w1.shape[0]
    n4 = w4.shape[1]

    # Glue: flatten, cast to bf16 (halves pad/DMA traffic), pad feat + batch.
    x = x_nchw.reshape(B, -1).astype(jnp.bfloat16)
    in_f = x.shape[1]
    tile_b = max(8, min(tile_b, _round_up(B, 8)))
    b_pad = _round_up(B, tile_b)
    x_p = jnp.pad(x, ((0, b_pad - B), (0, d0 - in_f)))

    grid = (b_pad // tile_b,)

    def tile_map(i):
        return (i, 0)

    def resident_map(i):
        return (0, 0)

    in_specs = [
        pl.BlockSpec((tile_b, d0), tile_map),       # x tile per grid step
        pl.BlockSpec(w1.shape, resident_map),       # weights/biases: constant
        pl.BlockSpec(b1.shape, resident_map),       # block index -> fetched
        pl.BlockSpec(w2.shape, resident_map),       # once, VMEM-resident
        pl.BlockSpec(b2.shape, resident_map),
        pl.BlockSpec(w3.shape, resident_map),
        pl.BlockSpec(b3.shape, resident_map),
        pl.BlockSpec(w4.shape, resident_map),
        pl.BlockSpec(b4.shape, resident_map),
    ]
    out_specs = pl.BlockSpec((tile_b, n4), tile_map)

    # Advisory cost estimate for XLA scheduling.
    flops = 2 * b_pad * (w1.shape[0] * w1.shape[1]
                         + w2.shape[0] * w2.shape[1]
                         + w3.shape[0] * w3.shape[1]
                         + w4.shape[0] * w4.shape[1])
    weight_bytes = sum(w.size * w.dtype.itemsize + b.size * b.dtype.itemsize
                       for w, b in params)
    bytes_accessed = x_p.size * 2 + weight_bytes + b_pad * n4 * 4
    cost = pl.CostEstimate(flops=flops,
                           transcendentals=b_pad * n4,
                           bytes_accessed=bytes_accessed)

    # VMEM budget: double-buffered x/out tiles + resident weights + headroom,
    # clamped to be safe on v7x's 64 MiB VMEM.
    tile_bytes = tile_b * d0 * 2 + tile_b * n4 * 4
    vmem_bytes = int(min(64 * 1024 * 1024,
                         max(32 * 1024 * 1024,
                             4 * tile_bytes + 2 * weight_bytes)))

    out_padded = pl.pallas_call(
        mlp_kernel,
        out_shape=jax.ShapeDtypeStruct((b_pad, n4), jnp.float32),
        grid=grid,
        in_specs=in_specs,
        out_specs=out_specs,
        compiler_params=pltpu.CompilerParams(
            dimension_semantics=("parallel",),
            vmem_limit_bytes=vmem_bytes),
        cost_estimate=cost,
    )(x_p, w1, b1, w2, b2, w3, b3, w4, b4)

    # Strip batch and class padding (layout plumbing, not compute).
    return out_padded[:B, :out_features]


if __name__ == "__main__":
    key = jax.random.PRNGKey(0)
    k_x, k_p = jax.random.split(key)

    # Small CIFAR-like input: batch=2, channels=3, spatial=8 -> in_features=192
    B, C, H, W = 2, 3, 8, 8
    in_features = C * H * W
    x = jax.random.normal(k_x, (B, C, H, W), jnp.float32)

    params = init_params(k_p, in_features, out_features=10)

    out = butterfly_mlp_forward(x, params, out_features=10)
    out = jax.block_until_ready(out)

    # sanity: log_softmax rows should (approximately) exp-sum to 1
    row_sums = jnp.exp(out).sum(axis=1)
    assert out.shape == (B, 10)
    assert bool(jnp.all(jnp.abs(row_sums - 1.0) < 1e-3))

    print("KERNEL_OK")
</pallas_src>

<mosaic_0001>
module attributes {stable_mosaic.version = 11 : i64} {
  func.func @mlp_kernel(%arg0: i32, %arg1: memref<8x256xbf16, #tpu.memory_space<vmem>>, %arg2: memref<256x512xbf16, #tpu.memory_space<vmem>>, %arg3: memref<1x512xf32, #tpu.memory_space<vmem>>, %arg4: memref<512x128xbf16, #tpu.memory_space<vmem>>, %arg5: memref<1x128xf32, #tpu.memory_space<vmem>>, %arg6: memref<128x128xbf16, #tpu.memory_space<vmem>>, %arg7: memref<1x128xf32, #tpu.memory_space<vmem>>, %arg8: memref<128x128xbf16, #tpu.memory_space<vmem>>, %arg9: memref<1x128xf32, #tpu.memory_space<vmem>>, %arg10: memref<8x128xf32, #tpu.memory_space<vmem>>) attributes {dimension_semantics = [#tpu.dimension_semantics<parallel>], iteration_bounds = array<i64: 1>, scalar_prefetch = 0 : i64, scratch_operands = 0 : i64, tpu.core_type = #tpu.core_type<tc>, window_params = [{transform_indices = @transform_0, window_bounds = array<i64: 8, 256>}, {pipeline_mode = #tpu.pipeline_mode<synchronous>, transform_indices = @transform_1, window_bounds = array<i64: 256, 512>}, {pipeline_mode = #tpu.pipeline_mode<synchronous>, transform_indices = @transform_2, window_bounds = array<i64: 1, 512>}, {pipeline_mode = #tpu.pipeline_mode<synchronous>, transform_indices = @transform_3, window_bounds = array<i64: 512, 128>}, {pipeline_mode = #tpu.pipeline_mode<synchronous>, transform_indices = @transform_4, window_bounds = array<i64: 1, 128>}, {pipeline_mode = #tpu.pipeline_mode<synchronous>, transform_indices = @transform_5, window_bounds = array<i64: 128, 128>}, {pipeline_mode = #tpu.pipeline_mode<synchronous>, transform_indices = @transform_6, window_bounds = array<i64: 1, 128>}, {pipeline_mode = #tpu.pipeline_mode<synchronous>, transform_indices = @transform_7, window_bounds = array<i64: 128, 128>}, {pipeline_mode = #tpu.pipeline_mode<synchronous>, transform_indices = @transform_8, window_bounds = array<i64: 1, 128>}, {transform_indices = @transform_9, window_bounds = array<i64: 8, 128>}]} {
    %c0 = arith.constant 0 : index
    %c0_0 = arith.constant 0 : index
    %0 = vector.load %arg1[%c0, %c0_0] : memref<8x256xbf16, #tpu.memory_space<vmem>>, vector<8x256xbf16>
    %c0_1 = arith.constant 0 : index
    %c0_2 = arith.constant 0 : index
    %1 = vector.load %arg2[%c0_1, %c0_2] : memref<256x512xbf16, #tpu.memory_space<vmem>>, vector<256x512xbf16>
    %cst = arith.constant dense<0.000000e+00> : vector<8x512xf32>
    %2 = tpu.matmul %0, %1, %cst {dimension_numbers = #tpu.dot_dimension_numbers<[1], [0], [0], [1], [0, 0, 1, 1], [], []>} : vector<8x256xbf16>, vector<256x512xbf16>, vector<8x512xf32> -> vector<8x512xf32>
    %c0_3 = arith.constant 0 : index
    %c0_4 = arith.constant 0 : index
    %3 = vector.load %arg3[%c0_3, %c0_4] : memref<1x512xf32, #tpu.memory_space<vmem>>, vector<1x512xf32>
    %4 = vector.broadcast %3 : vector<1x512xf32> to vector<8x512xf32>
    %5 = arith.addf %2, %4 : vector<8x512xf32>
    %cst_5 = arith.constant 0.000000e+00 : f32
    %6 = vector.broadcast %cst_5 : f32 to vector<8x512xf32>
    %7 = arith.maximumf %5, %6 : vector<8x512xf32>
    %8 = arith.truncf %7 : vector<8x512xf32> to vector<8x512xbf16>
    %c0_6 = arith.constant 0 : index
    %c0_7 = arith.constant 0 : index
    %9 = vector.load %arg4[%c0_6, %c0_7] : memref<512x128xbf16, #tpu.memory_space<vmem>>, vector<512x128xbf16>
    %cst_8 = arith.constant dense<0.000000e+00> : vector<8x128xf32>
    %10 = tpu.matmul %8, %9, %cst_8 {dimension_numbers = #tpu.dot_dimension_numbers<[1], [0], [0], [1], [0, 0, 1, 1], [], []>} : vector<8x512xbf16>, vector<512x128xbf16>, vector<8x128xf32> -> vector<8x128xf32>
    %c0_9 = arith.constant 0 : index
    %c0_10 = arith.constant 0 : index
    %11 = vector.load %arg5[%c0_9, %c0_10] : memref<1x128xf32, #tpu.memory_space<vmem>>, vector<1x128xf32>
    %12 = vector.broadcast %11 : vector<1x128xf32> to vector<8x128xf32>
    %13 = arith.addf %10, %12 : vector<8x128xf32>
    %cst_11 = arith.constant 0.000000e+00 : f32
    %14 = vector.broadcast %cst_11 : f32 to vector<8x128xf32>
    %15 = arith.maximumf %13, %14 : vector<8x128xf32>
    %16 = arith.truncf %15 : vector<8x128xf32> to vector<8x128xbf16>
    %c0_12 = arith.constant 0 : index
    %c0_13 = arith.constant 0 : index
    %17 = vector.load %arg6[%c0_12, %c0_13] : memref<128x128xbf16, #tpu.memory_space<vmem>>, vector<128x128xbf16>
    %cst_14 = arith.constant dense<0.000000e+00> : vector<8x128xf32>
    %18 = tpu.matmul %16, %17, %cst_14 {dimension_numbers = #tpu.dot_dimension_numbers<[1], [0], [0], [1], [0, 0, 1, 1], [], []>} : vector<8x128xbf16>, vector<128x128xbf16>, vector<8x128xf32> -> vector<8x128xf32>
    %c0_15 = arith.constant 0 : index
    %c0_16 = arith.constant 0 : index
    %19 = vector.load %arg7[%c0_15, %c0_16] : memref<1x128xf32, #tpu.memory_space<vmem>>, vector<1x128xf32>
    %20 = vector.broadcast %19 : vector<1x128xf32> to vector<8x128xf32>
    %21 = arith.addf %18, %20 : vector<8x128xf32>
    %cst_17 = arith.constant 0.000000e+00 : f32
    %22 = vector.broadcast %cst_17 : f32 to vector<8x128xf32>
    %23 = arith.maximumf %21, %22 : vector<8x128xf32>
    %24 = arith.truncf %23 : vector<8x128xf32> to vector<8x128xbf16>
    %c0_18 = arith.constant 0 : index
    %c0_19 = arith.constant 0 : index
    %25 = vector.load %arg8[%c0_18, %c0_19] : memref<128x128xbf16, #tpu.memory_space<vmem>>, vector<128x128xbf16>
    %cst_20 = arith.constant dense<0.000000e+00> : vector<8x128xf32>
    %26 = tpu.matmul %24, %25, %cst_20 {dimension_numbers = #tpu.dot_dimension_numbers<[1], [0], [0], [1], [0, 0, 1, 1], [], []>} : vector<8x128xbf16>, vector<128x128xbf16>, vector<8x128xf32> -> vector<8x128xf32>
    %c0_21 = arith.constant 0 : index
    %c0_22 = arith.constant 0 : index
    %27 = vector.load %arg9[%c0_21, %c0_22] : memref<1x128xf32, #tpu.memory_space<vmem>>, vector<1x128xf32>
    %28 = vector.broadcast %27 : vector<1x128xf32> to vector<8x128xf32>
    %29 = arith.addf %26, %28 : vector<8x128xf32>
    %cst_23 = arith.constant dense<0xFF800000> : vector<8xf32>
    %30 = vector.multi_reduction <maximumf>, %29, %cst_23 [1] : vector<8x128xf32> to vector<8xf32>
    %31 = vector.shape_cast %30 : vector<8xf32> to vector<8x1xf32>
    %32 = vector.broadcast %31 : vector<8x1xf32> to vector<8x128xf32>
    %33 = arith.subf %29, %32 : vector<8x128xf32>
    %34 = math.exp %33 : vector<8x128xf32>
    %cst_24 = arith.constant dense<0.000000e+00> : vector<8xf32>
    %35 = vector.multi_reduction <add>, %34, %cst_24 [1] : vector<8x128xf32> to vector<8xf32>
    %36 = vector.shape_cast %35 : vector<8xf32> to vector<8x1xf32>
    %37 = math.log %36 : vector<8x1xf32>
    %38 = vector.broadcast %37 : vector<8x1xf32> to vector<8x128xf32>
    %39 = arith.subf %33, %38 : vector<8x128xf32>
    %c0_25 = arith.constant 0 : index
    %c0_26 = arith.constant 0 : index
    %40 = vector.load %arg10[%c0_25, %c0_26] : memref<8x128xf32, #tpu.memory_space<vmem>>, vector<8x128xf32>
    tpu.vector_store %arg10[%c0_25, %c0_26], %39 {strides = array<i32>} : memref<8x128xf32, #tpu.memory_space<vmem>>, vector<8x128xf32>,
    return
  }
  func.func @transform_0(%arg0: i32) -> (i32, i32) {
    %c0_i32 = arith.constant 0 : i32
    %c0_i32_0 = arith.constant 0 : i32
    return %arg0, %c0_i32 : i32, i32
  }
  func.func @transform_1(%arg0: i32) -> (i32, i32) {
    %c0_i32 = arith.constant 0 : i32
    %c0_i32_0 = arith.constant 0 : i32
    %c0_i32_1 = arith.constant 0 : i32
    return %c0_i32, %c0_i32_0 : i32, i32
  }
  func.func @transform_2(%arg0: i32) -> (i32, i32) {
    %c0_i32 = arith.constant 0 : i32
    %c0_i32_0 = arith.constant 0 : i32
    %c0_i32_1 = arith.constant 0 : i32
    return %c0_i32, %c0_i32_0 : i32, i32
  }
  func.func @transform_3(%arg0: i32) -> (i32, i32) {
    %c0_i32 = arith.constant 0 : i32
    %c0_i32_0 = arith.constant 0 : i32
    %c0_i32_1 = arith.constant 0 : i32
    return %c0_i32, %c0_i32_0 : i32, i32
  }
  func.func @transform_4(%arg0: i32) -> (i32, i32) {
    %c0_i32 = arith.constant 0 : i32
    %c0_i32_0 = arith.constant 0 : i32
    %c0_i32_1 = arith.constant 0 : i32
    return %c0_i32, %c0_i32_0 : i32, i32
  }
  func.func @transform_5(%arg0: i32) -> (i32, i32) {
    %c0_i32 = arith.constant 0 : i32
    %c0_i32_0 = arith.constant 0 : i32
    %c0_i32_1 = arith.constant 0 : i32
    return %c0_i32, %c0_i32_0 : i32, i32
  }
  func.func @transform_6(%arg0: i32) -> (i32, i32) {
    %c0_i32 = arith.constant 0 : i32
    %c0_i32_0 = arith.constant 0 : i32
    %c0_i32_1 = arith.constant 0 : i32
    return %c0_i32, %c0_i32_0 : i32, i32
  }
  func.func @transform_7(%arg0: i32) -> (i32, i32) {
    %c0_i32 = arith.constant 0 : i32
    %c0_i32_0 = arith.constant 0 : i32
    %c0_i32_1 = arith.constant 0 : i32
    return %c0_i32, %c0_i32_0 : i32, i32
  }
  func.func @transform_8(%arg0: i32) -> (i32, i32) {
    %c0_i32 = arith.constant 0 : i32
    %c0_i32_0 = arith.constant 0 : i32
    %c0_i32_1 = arith.constant 0 : i32
    return %c0_i32, %c0_i32_0 : i32, i32
  }
  func.func @transform_9(%arg0: i32) -> (i32, i32) {
    %c0_i32 = arith.constant 0 : i32
    %c0_i32_0 = arith.constant 0 : i32
    return %arg0, %c0_i32 : i32, i32
  }
}

</mosaic_0001>

<llo_original>
// kernel: tpu_custom_call.1
$region0: #{tpu_custom_call.1}
  #allocation0 [shape = 'u32[]', space=smem, size = 0x4, offset = 0x4, fixed_abs, tag = 'smem constant byte address 0x4 - core index']
  #allocation1 [shape = 'u32[144,128]{1,0:T(1,128)}', space=vmem, size = 0x12000, scoped, tag = 'internal scratch']
  %s0 = inlined_call_operand.hbm [shape: bf16[8,256], index: 0, kind: input, shape index: {}]
  %s1 = inlined_call_operand.hbm [shape: bf16[256,512], index: 1, kind: input, shape index: {}]
  %s2 = inlined_call_operand.vmem [shape: f32[1,512], index: 2, kind: input, shape index: {}]
  %s3 = inlined_call_operand.hbm [shape: bf16[512,128], index: 3, kind: input, shape index: {}]
  %s4 = inlined_call_operand.vmem [shape: f32[1,128], index: 4, kind: input, shape index: {}]
  %s5 = inlined_call_operand.hbm [shape: bf16[128,128], index: 5, kind: input, shape index: {}]
  %s6 = inlined_call_operand.vmem [shape: f32[1,128], index: 6, kind: input, shape index: {}]
  %s7 = inlined_call_operand.hbm [shape: bf16[128,128], index: 7, kind: input, shape index: {}]
  %s8 = inlined_call_operand.vmem [shape: f32[1,128], index: 8, kind: input, shape index: {}]
  %s9 = inlined_call_operand.hbm [shape: f32[8,128], index: 9, kind: output, shape index: {}]
  %s10 = sld [smem:[#allocation0]]
  $region66: #{tpu_custom_call.1} parent=0
    _
  %s12 = ssub.s32 1, %s10
  %s13 = scalar_select 0, %s12, %s10
  $region1: #{tpu_custom_call.1} parent=0
    #allocation2 [shape = 'u8[4096]{0}', space=vmem, size = 0x1000, scoped, tag = 'input window, operand 0, single buffered']
    #allocation3 [shape = 's32[1]{0}', space=sflag, size = 0x4, scoped, tag = 'scoped memory for tpu_custom_call.1']
    #allocation4 [shape = 's32[1]{0}', space=sflag, size = 0x4, scoped, tag = 'scoped memory for tpu_custom_call.1']
    #allocation5 [shape = 'u8[262144]{0}', space=vmem, size = 0x40000, scoped, tag = 'input window, operand 1, single buffered']
    #allocation6 [shape = 's32[1]{0}', space=sflag, size = 0x4, scoped, tag = 'scoped memory for tpu_custom_call.1']
    #allocation7 [shape = 'u8[131072]{0}', space=vmem, size = 0x20000, scoped, tag = 'input window, operand 3, single buffered']
    #allocation8 [shape = 'u8[32768]{0}', space=vmem, size = 0x8000, scoped, tag = 'input window, operand 5, single buffered']
    #allocation9 [shape = 's32[1]{0}', space=sflag, size = 0x4, scoped, tag = 'scoped memory for tpu_custom_call.1']
    #allocation10 [shape = 'u8[32768]{0}', space=vmem, size = 0x8000, scoped, tag = 'input window, operand 7, single buffered']
    #allocation11 [shape = 'u8[4096]{0}', space=vmem, size = 0x1000, scoped, tag = 'output window, operand 0, single buffered']
    %14 = vsyncpa [#allocation3], 0
    %15 = vsyncpa [#allocation6], 0
    %16 = vsyncpa [#allocation9], 0
    %17 = vsyncpa [#allocation4], 0
    // Predicated region
    $region2: #{tpu_custom_call.1} parent=1 // pred_check
      _
    $region3: #{tpu_custom_call.1} parent=1 // pred_check_branch
      %19 = sbr.rel (0) target = $region5
    $region4: #{tpu_custom_call.1} parent=1 // pred_region
      %s21 = ssub.s32 128, 128
      %22 = vsyncadd [#allocation3], %s21
      %s24 = sshll.u32 [#allocation2], 4
      %s25 = int_to_ptr.vmem [resolvable:$true] %s24
      %27 = dma.hbm_to_vmem [thread:$0]  %s0, 128, %s25, [#allocation3]
    $region5: #{tpu_custom_call.1} parent=1 // pred_fallthru
      _
    // Predicated region
    $region6: #{tpu_custom_call.1} parent=1 // pred_check
      _
    $region7: #{tpu_custom_call.1} parent=1 // pred_check_branch
      %29 = sbr.rel (0) target = $region9
    $region8: #{tpu_custom_call.1} parent=1 // pred_region
      %s31 = ssub.s32 8192, 8192
      %32 = vsyncadd [#allocation6], %s31
      %s33 = sshll.u32 [#allocation5], 4
      %s34 = int_to_ptr.vmem [resolvable:$true] %s33
      %39 = dma.hbm_to_vmem [thread:$0]  %s1, 8192, %s34, [#allocation6], 256, 256, 16
    $region9: #{tpu_custom_call.1} parent=1 // pred_fallthru
      _
    // Predicated region
    $region10: #{tpu_custom_call.1} parent=1 // pred_check
      _
    $region11: #{tpu_custom_call.1} parent=1 // pred_check_branch
      %41 = sbr.rel (0) target = $region13
    $region12: #{tpu_custom_call.1} parent=1 // pred_region
      _
    $region13: #{tpu_custom_call.1} parent=1 // pred_fallthru
      _
    // Predicated region
    $region14: #{tpu_custom_call.1} parent=1 // pred_check
      _
    $region15: #{tpu_custom_call.1} parent=1 // pred_check_branch
      %43 = sbr.rel (0) target = $region17
    $region16: #{tpu_custom_call.1} parent=1 // pred_region
      %s45 = ssub.s32 4096, 4096
      %46 = vsyncadd [#allocation6], %s45
      %s47 = sshll.u32 [#allocation7], 4
      %s48 = int_to_ptr.vmem [resolvable:$true] %s47
      %53 = dma.hbm_to_vmem [thread:$0]  %s3, 4096, %s48, [#allocation6], 64, 64, 4
    $region17: #{tpu_custom_call.1} parent=1 // pred_fallthru
      _
    // Predicated region
    $region18: #{tpu_custom_call.1} parent=1 // pred_check
      _
    $region19: #{tpu_custom_call.1} parent=1 // pred_check_branch
      %55 = sbr.rel (0) target = $region21
    $region20: #{tpu_custom_call.1} parent=1 // pred_region
      _
    $region21: #{tpu_custom_call.1} parent=1 // pred_fallthru
      _
    // Predicated region
    $region22: #{tpu_custom_call.1} parent=1 // pred_check
      _
    $region23: #{tpu_custom_call.1} parent=1 // pred_check_branch
      %57 = sbr.rel (0) target = $region25
    $region24: #{tpu_custom_call.1} parent=1 // pred_region
      %s59 = ssub.s32 1024, 1024
      %60 = vsyncadd [#allocation9], %s59
      %s61 = sshll.u32 [#allocation8], 4
      %s62 = int_to_ptr.vmem [resolvable:$true] %s61
      %67 = dma.hbm_to_vmem [thread:$0]  %s5, 1024, %s62, [#allocation9], 64, 64, 4
    $region25: #{tpu_custom_call.1} parent=1 // pred_fallthru
      _
    // Predicated region
    $region26: #{tpu_custom_call.1} parent=1 // pred_check
      _
    $region27: #{tpu_custom_call.1} parent=1 // pred_check_branch
      %69 = sbr.rel (0) target = $region29
    $region28: #{tpu_custom_call.1} parent=1 // pred_region
      _
    $region29: #{tpu_custom_call.1} parent=1 // pred_fallthru
      _
    // Predicated region
    $region30: #{tpu_custom_call.1} parent=1 // pred_check
      _
    $region31: #{tpu_custom_call.1} parent=1 // pred_check_branch
      %71 = sbr.rel (0) target = $region33
    $region32: #{tpu_custom_call.1} parent=1 // pred_region
      %s73 = ssub.s32 1024, 1024
      %74 = vsyncadd [#allocation9], %s73
      %s75 = sshll.u32 [#allocation10], 4
      %s76 = int_to_ptr.vmem [resolvable:$true] %s75
      %81 = dma.hbm_to_vmem [thread:$0]  %s7, 1024, %s76, [#allocation9], 64, 64, 4
    $region33: #{tpu_custom_call.1} parent=1 // pred_fallthru
      _
    // Predicated region
    $region34: #{tpu_custom_call.1} parent=1 // pred_check
      _
    $region35: #{tpu_custom_call.1} parent=1 // pred_check_branch
      %83 = sbr.rel (0) target = $region37
    $region36: #{tpu_custom_call.1} parent=1 // pred_region
      _
    $region37: #{tpu_custom_call.1} parent=1 // pred_fallthru
      _
    // Predicated region
    $region38: #{tpu_custom_call.1} parent=1 // pred_check
      _
    $region39: #{tpu_custom_call.1} parent=1 // pred_check_branch
      %85 = sbr.rel (0) target = $region41
    $region40: #{tpu_custom_call.1} parent=1 // pred_region
      %86 = dma.done [#allocation3], 128
    $region41: #{tpu_custom_call.1} parent=1 // pred_fallthru
      _
    // Predicated region
    $region42: #{tpu_custom_call.1} parent=1 // pred_check
      _
    $region43: #{tpu_custom_call.1} parent=1 // pred_check_branch
      %88 = sbr.rel (0) target = $region45
    $region44: #{tpu_custom_call.1} parent=1 // pred_region
      %89 = dma.done [#allocation6], 8192
    $region45: #{tpu_custom_call.1} parent=1 // pred_fallthru
      _
    // Predicated region
    $region46: #{tpu_custom_call.1} parent=1 // pred_check
      _
    $region47: #{tpu_custom_call.1} parent=1 // pred_check_branch
      %91 = sbr.rel (0) target = $region49
    $region48: #{tpu_custom_call.1} parent=1 // pred_region
      %92 = dma.done [#allocation6], 4096
    $region49: #{tpu_custom_call.1} parent=1 // pred_fallthru
      _
    // Predicated region
    $region50: #{tpu_custom_call.1} parent=1 // pred_check
      _
    $region51: #{tpu_custom_call.1} parent=1 // pred_check_branch
      %94 = sbr.rel (0) target = $region53
    $region52: #{tpu_custom_call.1} parent=1 // pred_region
      %95 = dma.done [#allocation9], 1024
    $region53: #{tpu_custom_call.1} parent=1 // pred_fallthru
      _
    // Predicated region
    $region54: #{tpu_custom_call.1} parent=1 // pred_check
      _
    $region55: #{tpu_custom_call.1} parent=1 // pred_check_branch
      %97 = sbr.rel (0) target = $region57
    $region56: #{tpu_custom_call.1} parent=1 // pred_region
      %98 = dma.done [#allocation9], 1024
    $region57: #{tpu_custom_call.1} parent=1 // pred_fallthru
      _
    %v100 = vld [vmem:[#allocation2] sm:$0xff]
    %v101 = vld [vmem:[#allocation5] sm:$0xff]
    %v102 = vld [vmem:[#allocation5 + $0x8] sm:$0xff]
    %v103 = vld [vmem:[#allocation5 + $0x10] sm:$0xff]
    %v104 = vld [vmem:[#allocation5 + $0x18] sm:$0xff]
    %v105 = vld [vmem:[#allocation5 + $0x20] sm:$0xff]
    %v106 = vld [vmem:[#allocation5 + $0x28] sm:$0xff]
    %v107 = vld [vmem:[#allocation5 + $0x30] sm:$0xff]
    %v108 = vld [vmem:[#allocation5 + $0x38] sm:$0xff]
    %v109 = vld [vmem:[#allocation5 + $0x40] sm:$0xff]
    %v110 = vld [vmem:[#allocation5 + $0x48] sm:$0xff]
    %v111 = vld [vmem:[#allocation5 + $0x50] sm:$0xff]
    %v112 = vld [vmem:[#allocation5 + $0x58] sm:$0xff]
    %v113 = vld [vmem:[#allocation5 + $0x60] sm:$0xff]
    %v114 = vld [vmem:[#allocation5 + $0x68] sm:$0xff]
    %v115 = vld [vmem:[#allocation5 + $0x70] sm:$0xff]
    %v116 = vld [vmem:[#allocation5 + $0x78] sm:$0xff]
    %v117 = vld [vmem:[#allocation5 + $0x80] sm:$0xff]
    %v118 = vld [vmem:[#allocation5 + $0x88] sm:$0xff]
    %v119 = vld [vmem:[#allocation5 + $0x90] sm:$0xff]
    %v120 = vld [vmem:[#allocation5 + $0x98] sm:$0xff]
    %v121 = vld [vmem:[#allocation5 + $0xa0] sm:$0xff]
    %v122 = vld [vmem:[#allocation5 + $0xa8] sm:$0xff]
    %v123 = vld [vmem:[#allocation5 + $0xb0] sm:$0xff]
    %v124 = vld [vmem:[#allocation5 + $0xb8] sm:$0xff]
    %v125 = vld [vmem:[#allocation5 + $0xc0] sm:$0xff]
    %v126 = vld [vmem:[#allocation5 + $0xc8] sm:$0xff]
    %v127 = vld [vmem:[#allocation5 + $0xd0] sm:$0xff]
    %v128 = vld [vmem:[#allocation5 + $0xd8] sm:$0xff]
    %v129 = vld [vmem:[#allocation5 + $0xe0] sm:$0xff]
    %v130 = vld [vmem:[#allocation5 + $0xe8] sm:$0xff]
    %v131 = vld [vmem:[#allocation5 + $0xf0] sm:$0xff]
    %v132 = vld [vmem:[#allocation5 + $0xf8] sm:$0xff]
    %v133 = vld [vmem:[#allocation5 + $0x100] sm:$0xff]
    %v134 = vld [vmem:[#allocation5 + $0x108] sm:$0xff]
    %v135 = vld [vmem:[#allocation5 + $0x110] sm:$0xff]
    %v136 = vld [vmem:[#allocation5 + $0x118] sm:$0xff]
    %v137 = vld [vmem:[#allocation5 + $0x120] sm:$0xff]
    %v138 = vld [vmem:[#allocation5 + $0x128] sm:$0xff]
    %v139 = vld [vmem:[#allocation5 + $0x130] sm:$0xff]
    %v140 = vld [vmem:[#allocation5 + $0x138] sm:$0xff]
    %v141 = vld [vmem:[#allocation5 + $0x140] sm:$0xff]
    %v142 = vld [vmem:[#allocation5 + $0x148] sm:$0xff]
    %v143 = vld [vmem:[#allocation5 + $0x150] sm:$0xff]
    %v144 = vld [vmem:[#allocation5 + $0x158] sm:$0xff]
    %v145 = vld [vmem:[#allocation5 + $0x160] sm:$0xff]
    %v146 = vld [vmem:[#allocation5 + $0x168] sm:$0xff]
    %v147 = vld [vmem:[#allocation5 + $0x170] sm:$0xff]
    %v148 = vld [vmem:[#allocation5 + $0x178] sm:$0xff]
    %v149 = vld [vmem:[#allocation5 + $0x180] sm:$0xff]
    %v150 = vld [vmem:[#allocation5 + $0x188] sm:$0xff]
    %v151 = vld [vmem:[#allocation5 + $0x190] sm:$0xff]
    %v152 = vld [vmem:[#allocation5 + $0x198] sm:$0xff]
    %v153 = vld [vmem:[#allocation5 + $0x1a0] sm:$0xff]
    %v154 = vld [vmem:[#allocation5 + $0x1a8] sm:$0xff]
    %v155 = vld [vmem:[#allocation5 + $0x1b0] sm:$0xff]
    %v156 = vld [vmem:[#allocation5 + $0x1b8] sm:$0xff]
    %v157 = vld [vmem:[#allocation5 + $0x1c0] sm:$0xff]
    %v158 = vld [vmem:[#allocation5 + $0x1c8] sm:$0xff]
    %v159 = vld [vmem:[#allocation5 + $0x1d0] sm:$0xff]
    %v160 = vld [vmem:[#allocation5 + $0x1d8] sm:$0xff]
    %v161 = vld [vmem:[#allocation5 + $0x1e0] sm:$0xff]
    %v162 = vld [vmem:[#allocation5 + $0x1e8] sm:$0xff]
    %v163 = vld [vmem:[#allocation5 + $0x1f0] sm:$0xff]
    %v164 = vld [vmem:[#allocation5 + $0x1f8] sm:$0xff]
    %v165 = vld [vmem:[%s2] sm:$0xf]
    %v167 = vlaneseq
    %v168 = vshrl.u32 %v167, 7
    %v169 = vsub.s32 0, %v168
    %v170 = vrot.slane %v165, %v169
    %v171 = vlaneseq
    %v172 = vshrl.u32 %v171, 7
    %v173 = vsub.s32 1, %v172
    %v174 = vrot.slane %v165, %v173
    %v175 = vlaneseq
    %v176 = vshrl.u32 %v175, 7
    %v177 = vsub.s32 2, %v176
    %v178 = vrot.slane %v165, %v177
    %v179 = vlaneseq
    %v180 = vshrl.u32 %v179, 7
    %v181 = vsub.s32 3, %v180
    %v182 = vrot.slane %v165, %v181
    %v188 = vunpack.c.l.b16 %v100
    %v189 = vunpack.c.h.b16 %v100
    %v190 = vpack.c.b16 %v188, %v188
    %v191 = vpack.c.b16 %v189, %v189
    %v258 = vunpack.c.l.b16 %v101
    %v259 = vunpack.c.h.b16 %v101
    %v260 = vunpack.c.l.b16 %v102
    %v261 = vunpack.c.h.b16 %v102
    %v262 = vunpack.c.l.b16 %v103
    %v263 = vunpack.c.h.b16 %v103
    %v264 = vunpack.c.l.b16 %v104
    %v265 = vunpack.c.h.b16 %v104
    %v266 = vunpack.c.l.b16 %v105
    %v267 = vunpack.c.h.b16 %v105
    %v268 = vunpack.c.l.b16 %v106
    %v269 = vunpack.c.h.b16 %v106
    %v270 = vunpack.c.l.b16 %v107
    %v271 = vunpack.c.h.b16 %v107
    %v272 = vunpack.c.l.b16 %v108
    %v273 = vunpack.c.h.b16 %v108
    %v274 = vunpack.c.l.b16 %v109
    %v275 = vunpack.c.h.b16 %v109
    %v276 = vunpack.c.l.b16 %v110
    %v277 = vunpack.c.h.b16 %v110
    %v278 = vunpack.c.l.b16 %v111
    %v279 = vunpack.c.h.b16 %v111
    %v280 = vunpack.c.l.b16 %v112
    %v281 = vunpack.c.h.b16 %v112
    %v282 = vunpack.c.l.b16 %v113
    %v283 = vunpack.c.h.b16 %v113
    %v284 = vunpack.c.l.b16 %v114
    %v285 = vunpack.c.h.b16 %v114
    %v286 = vunpack.c.l.b16 %v115
    %v287 = vunpack.c.h.b16 %v115
    %v288 = vunpack.c.l.b16 %v116
    %v289 = vunpack.c.h.b16 %v116
    %v290 = vunpack.c.l.b16 %v117
    %v291 = vunpack.c.h.b16 %v117
    %v292 = vunpack.c.l.b16 %v118
    %v293 = vunpack.c.h.b16 %v118
    %v294 = vunpack.c.l.b16 %v119
    %v295 = vunpack.c.h.b16 %v119
    %v296 = vunpack.c.l.b16 %v120
    %v297 = vunpack.c.h.b16 %v120
    %v298 = vunpack.c.l.b16 %v121
    %v299 = vunpack.c.h.b16 %v121
    %v300 = vunpack.c.l.b16 %v122
    %v301 = vunpack.c.h.b16 %v122
    %v302 = vunpack.c.l.b16 %v123
    %v303 = vunpack.c.h.b16 %v123
    %v304 = vunpack.c.l.b16 %v124
    %v305 = vunpack.c.h.b16 %v124
    %v306 = vunpack.c.l.b16 %v125
    %v307 = vunpack.c.h.b16 %v125
    %v308 = vunpack.c.l.b16 %v126
    %v309 = vunpack.c.h.b16 %v126
    %v310 = vunpack.c.l.b16 %v127
    %v311 = vunpack.c.h.b16 %v127
    %v312 = vunpack.c.l.b16 %v128
    %v313 = vunpack.c.h.b16 %v128
    %v314 = vunpack.c.l.b16 %v129
    %v315 = vunpack.c.h.b16 %v129
    %v316 = vunpack.c.l.b16 %v130
    %v317 = vunpack.c.h.b16 %v130
    %v318 = vunpack.c.l.b16 %v131
    %v319 = vunpack.c.h.b16 %v131
    %v320 = vunpack.c.l.b16 %v132
    %v321 = vunpack.c.h.b16 %v132
    %v322 = vunpack.c.l.b16 %v133
    %v323 = vunpack.c.h.b16 %v133
    %v324 = vunpack.c.l.b16 %v134
    %v325 = vunpack.c.h.b16 %v134
    %v326 = vunpack.c.l.b16 %v135
    %v327 = vunpack.c.h.b16 %v135
    %v328 = vunpack.c.l.b16 %v136
    %v329 = vunpack.c.h.b16 %v136
    %v330 = vunpack.c.l.b16 %v137
    %v331 = vunpack.c.h.b16 %v137
    %v332 = vunpack.c.l.b16 %v138
    %v333 = vunpack.c.h.b16 %v138
    %v334 = vunpack.c.l.b16 %v139
    %v335 = vunpack.c.h.b16 %v139
    %v336 = vunpack.c.l.b16 %v140
    %v337 = vunpack.c.h.b16 %v140
    %v338 = vunpack.c.l.b16 %v141
    %v339 = vunpack.c.h.b16 %v141
    %v340 = vunpack.c.l.b16 %v142
    %v341 = vunpack.c.h.b16 %v142
    %v342 = vunpack.c.l.b16 %v143
    %v343 = vunpack.c.h.b16 %v143
    %v344 = vunpack.c.l.b16 %v144
    %v345 = vunpack.c.h.b16 %v144
    %v346 = vunpack.c.l.b16 %v145
    %v347 = vunpack.c.h.b16 %v145
    %v348 = vunpack.c.l.b16 %v146
    %v349 = vunpack.c.h.b16 %v146
    %v350 = vunpack.c.l.b16 %v147
    %v351 = vunpack.c.h.b16 %v147
    %v352 = vunpack.c.l.b16 %v148
    %v353 = vunpack.c.h.b16 %v148
    %v354 = vunpack.c.l.b16 %v149
    %v355 = vunpack.c.h.b16 %v149
    %v356 = vunpack.c.l.b16 %v150
    %v357 = vunpack.c.h.b16 %v150
    %v358 = vunpack.c.l.b16 %v151
    %v359 = vunpack.c.h.b16 %v151
    %v360 = vunpack.c.l.b16 %v152
    %v361 = vunpack.c.h.b16 %v152
    %v362 = vunpack.c.l.b16 %v153
    %v363 = vunpack.c.h.b16 %v153
    %v364 = vunpack.c.l.b16 %v154
    %v365 = vunpack.c.h.b16 %v154
    %v366 = vunpack.c.l.b16 %v155
    %v367 = vunpack.c.h.b16 %v155
    %v368 = vunpack.c.l.b16 %v156
    %v369 = vunpack.c.h.b16 %v156
    %v370 = vunpack.c.l.b16 %v157
    %v371 = vunpack.c.h.b16 %v157
    %v372 = vunpack.c.l.b16 %v158
    %v373 = vunpack.c.h.b16 %v158
    %v374 = vunpack.c.l.b16 %v159
    %v375 = vunpack.c.h.b16 %v159
    %v376 = vunpack.c.l.b16 %v160
    %v377 = vunpack.c.h.b16 %v160
    %v378 = vunpack.c.l.b16 %v161
    %v379 = vunpack.c.h.b16 %v161
    %v380 = vunpack.c.l.b16 %v162
    %v381 = vunpack.c.h.b16 %v162
    %v382 = vunpack.c.l.b16 %v163
    %v383 = vunpack.c.h.b16 %v163
    %v384 = vunpack.c.l.b16 %v164
    %v385 = vunpack.c.h.b16 %v164
    %v386 = vpack.c.b16 %v262, %v258
    %v387 = vpack.c.b16 %v263, %v259
    %v388 = vpack.c.b16 %v264, %v260
    %v389 = vpack.c.b16 %v265, %v261
    %v390 = vpack.c.b16 %v270, %v266
    %v391 = vpack.c.b16 %v271, %v267
    %v392 = vpack.c.b16 %v272, %v268
    %v393 = vpack.c.b16 %v273, %v269
    %v394 = vpack.c.b16 %v278, %v274
    %v395 = vpack.c.b16 %v279, %v275
    %v396 = vpack.c.b16 %v280, %v276
    %v397 = vpack.c.b16 %v281, %v277
    %v398 = vpack.c.b16 %v286, %v282
    %v399 = vpack.c.b16 %v287, %v283
    %v400 = vpack.c.b16 %v288, %v284
    %v401 = vpack.c.b16 %v289, %v285
    %v402 = vpack.c.b16 %v294, %v290
    %v403 = vpack.c.b16 %v295, %v291
    %v404 = vpack.c.b16 %v296, %v292
    %v405 = vpack.c.b16 %v297, %v293
    %v406 = vpack.c.b16 %v302, %v298
    %v407 = vpack.c.b16 %v303, %v299
    %v408 = vpack.c.b16 %v304, %v300
    %v409 = vpack.c.b16 %v305, %v301
    %v410 = vpack.c.b16 %v310, %v306
    %v411 = vpack.c.b16 %v311, %v307
    %v412 = vpack.c.b16 %v312, %v308
    %v413 = vpack.c.b16 %v313, %v309
    %v414 = vpack.c.b16 %v318, %v314
    %v415 = vpack.c.b16 %v319, %v315
    %v416 = vpack.c.b16 %v320, %v316
    %v417 = vpack.c.b16 %v321, %v317
    %v418 = vpack.c.b16 %v326, %v322
    %v419 = vpack.c.b16 %v327, %v323
    %v420 = vpack.c.b16 %v328, %v324
    %v421 = vpack.c.b16 %v329, %v325
    %v422 = vpack.c.b16 %v334, %v330
    %v423 = vpack.c.b16 %v335, %v331
    %v424 = vpack.c.b16 %v336, %v332
    %v425 = vpack.c.b16 %v337, %v333
    %v426 = vpack.c.b16 %v342, %v338
    %v427 = vpack.c.b16 %v343, %v339
    %v428 = vpack.c.b16 %v344, %v340
    %v429 = vpack.c.b16 %v345, %v341
    %v430 = vpack.c.b16 %v350, %v346
    %v431 = vpack.c.b16 %v351, %v347
    %v432 = vpack.c.b16 %v352, %v348
    %v433 = vpack.c.b16 %v353, %v349
    %v434 = vpack.c.b16 %v358, %v354
    %v435 = vpack.c.b16 %v359, %v355
    %v436 = vpack.c.b16 %v360, %v356
    %v437 = vpack.c.b16 %v361, %v357
    %v438 = vpack.c.b16 %v366, %v362
    %v439 = vpack.c.b16 %v367, %v363
    %v440 = vpack.c.b16 %v368, %v364
    %v441 = vpack.c.b16 %v369, %v365
    %v442 = vpack.c.b16 %v374, %v370
    %v443 = vpack.c.b16 %v375, %v371
    %v444 = vpack.c.b16 %v376, %v372
    %v445 = vpack.c.b16 %v377, %v373
    %v446 = vpack.c.b16 %v382, %v378
    %v447 = vpack.c.b16 %v383, %v379
    %v448 = vpack.c.b16 %v384, %v380
    %v449 = vpack.c.b16 %v385, %v381
    %514 = vmatprep.subr.bf16.mxu0 %v387
    %515 = vmatpush1.bf16.msra.mxu0 %v386
    %516 = vmatprep.subr.bf16.mxu0 %v391
    %517 = vmatpush1.bf16.msra.mxu0 %v390
    %518 = vmatprep.subr.bf16.mxu0 %v395
    %519 = vmatpush1.bf16.msra.mxu0 %v394
    %520 = vmatprep.subr.bf16.mxu0 %v399
    %521 = vmatpush1.bf16.msra.mxu0 %v398
    %522 = vmatprep.subr.bf16.mxu0 %v403
    %523 = vmatpush1.bf16.msra.mxu0 %v402
    %524 = vmatprep.subr.bf16.mxu0 %v407
    %525 = vmatpush1.bf16.msra.mxu0 %v406
    %526 = vmatprep.subr.bf16.mxu0 %v411
    %527 = vmatpush1.bf16.msra.mxu0 %v410
    %528 = vmatprep.subr.bf16.mxu0 %v415
    %529 = vmatpush1.bf16.msra.mxu0 %v414
    %530 = vmatprep.subr.bf16.mxu0 %v419
    %531 = vmatpush1.bf16.msra.mxu0 %v418
    %532 = vmatprep.subr.bf16.mxu0 %v423
    %533 = vmatpush1.bf16.msra.mxu0 %v422
    %534 = vmatprep.subr.bf16.mxu0 %v427
    %535 = vmatpush1.bf16.msra.mxu0 %v426
    %536 = vmatprep.subr.bf16.mxu0 %v431
    %537 = vmatpush1.bf16.msra.mxu0 %v430
    %538 = vmatprep.subr.bf16.mxu0 %v435
    %539 = vmatpush1.bf16.msra.mxu0 %v434
    %540 = vmatprep.subr.bf16.mxu0 %v439
    %541 = vmatpush1.bf16.msra.mxu0 %v438
    %542 = vmatprep.subr.bf16.mxu0 %v443
    %543 = vmatpush1.bf16.msra.mxu0 %v442
    %544 = vmatprep.subr.bf16.mxu0 %v447
    %545 = vmatpush1.bf16.msra.mxu0 %v446
    %546 = vmatprep.mubr.bf16.mxu0 %v191
    %547 = vmatmul.mubr.bf16.gmra.mrb[0].mxu0 %v190
    %v548 = vpop.f32.mrb[0].mxu0
    %v549 = vadd.f32 %v170, %v548
    %v550 = vpop.f32.mrb[0].mxu0
    %v551 = vadd.f32 %v174, %v550
    %v552 = vpop.f32.mrb[0].mxu0
    %v553 = vpop.f32.mrb[0].mxu0
    %554 = vdwg.mxu0
    %555 = vmatprep.subr.bf16.mxu0 %v389
    %556 = vmatpush1.bf16.msra.mxu0 %v388
    %557 = vmatprep.subr.bf16.mxu0 %v393
    %558 = vmatpush1.bf16.msra.mxu0 %v392
    %559 = vmatprep.subr.bf16.mxu0 %v397
    %560 = vmatpush1.bf16.msra.mxu0 %v396
    %561 = vmatprep.subr.bf16.mxu0 %v401
    %562 = vmatpush1.bf16.msra.mxu0 %v400
    %563 = vmatprep.subr.bf16.mxu0 %v405
    %564 = vmatpush1.bf16.msra.mxu0 %v404
    %565 = vmatprep.subr.bf16.mxu0 %v409
    %566 = vmatpush1.bf16.msra.mxu0 %v408
    %567 = vmatprep.subr.bf16.mxu0 %v413
    %568 = vmatpush1.bf16.msra.mxu0 %v412
    %569 = vmatprep.subr.bf16.mxu0 %v417
    %570 = vmatpush1.bf16.msra.mxu0 %v416
    %571 = vmatprep.subr.bf16.mxu0 %v421
    %572 = vmatpush1.bf16.msra.mxu0 %v420
    %573 = vmatprep.subr.bf16.mxu0 %v425
    %574 = vmatpush1.bf16.msra.mxu0 %v424
    %575 = vmatprep.subr.bf16.mxu0 %v429
    %576 = vmatpush1.bf16.msra.mxu0 %v428
    %577 = vmatprep.subr.bf16.mxu0 %v433
    %578 = vmatpush1.bf16.msra.mxu0 %v432
    %579 = vmatprep.subr.bf16.mxu0 %v437
    %580 = vmatpush1.bf16.msra.mxu0 %v436
    %581 = vmatprep.subr.bf16.mxu0 %v441
    %582 = vmatpush1.bf16.msra.mxu0 %v440
    %583 = vmatprep.subr.bf16.mxu0 %v445
    %584 = vmatpush1.bf16.msra.mxu0 %v444
    %585 = vmatprep.subr.bf16.mxu0 %v449
    %586 = vmatpush1.bf16.msra.mxu0 %v448
    %587 = vmatprep.mubr.bf16.mxu0 %v191
    %588 = vmatmul.mubr.bf16.gmra.mrb[0].mxu0 %v190
    %v589 = vpop.f32.mrb[0].mxu0
    %v590 = vadd.f32 %v178, %v589
    %v591 = vpop.f32.mrb[0].mxu0
    %v592 = vadd.f32 %v182, %v591
    %v593 = vpop.f32.mrb[0].mxu0
    %v594 = vpop.f32.mrb[0].mxu0
    %595 = vdwg.mxu0
    %v596 = vmax.f32 %v549, 0.0
    %v597 = vmax.f32 %v551, 0.0
    %v598 = vmax.f32 %v590, 0.0
    %v599 = vmax.f32 %v592, 0.0
    %v600 = vpack.c.bf16 %v596, %v596
    %v601 = vpack.c.bf16 %v597, %v597
    %v602 = vpack.c.bf16 %v598, %v598
    %v603 = vpack.c.bf16 %v599, %v599
    %v604 = vld [vmem:[#allocation7] sm:$0xf]
    %v605 = vld [vmem:[#allocation7 + $0x4] sm:$0xf]
    %v606 = vld [vmem:[#allocation7 + $0x8] sm:$0xf]
    %v607 = vld [vmem:[#allocation7 + $0xc] sm:$0xf]
    %v608 = vld [vmem:[#allocation7 + $0x10] sm:$0xf]
    %v609 = vld [vmem:[#allocation7 + $0x14] sm:$0xf]
    %v610 = vld [vmem:[#allocation7 + $0x18] sm:$0xf]
    %v611 = vld [vmem:[#allocation7 + $0x1c] sm:$0xf]
    %v612 = vld [vmem:[#allocation7 + $0x20] sm:$0xf]
    %v613 = vld [vmem:[#allocation7 + $0x24] sm:$0xf]
    %v614 = vld [vmem:[#allocation7 + $0x28] sm:$0xf]
    %v615 = vld [vmem:[#allocation7 + $0x2c] sm:$0xf]
    %v616 = vld [vmem:[#allocation7 + $0x30] sm:$0xf]
    %v617 = vld [vmem:[#allocation7 + $0x34] sm:$0xf]
    %v618 = vld [vmem:[#allocation7 + $0x38] sm:$0xf]
    %v619 = vld [vmem:[#allocation7 + $0x3c] sm:$0xf]
    %v620 = vld [vmem:[#allocation7 + $0x40] sm:$0xf]
    %v621 = vld [vmem:[#allocation7 + $0x44] sm:$0xf]
    %v622 = vld [vmem:[#allocation7 + $0x48] sm:$0xf]
    %v623 = vld [vmem:[#allocation7 + $0x4c] sm:$0xf]
    %v624 = vld [vmem:[#allocation7 + $0x50] sm:$0xf]
    %v625 = vld [vmem:[#allocation7 + $0x54] sm:$0xf]
    %v626 = vld [vmem:[#allocation7 + $0x58] sm:$0xf]
    %v627 = vld [vmem:[#allocation7 + $0x5c] sm:$0xf]
    %v628 = vld [vmem:[#allocation7 + $0x60] sm:$0xf]
    %v629 = vld [vmem:[#allocation7 + $0x64] sm:$0xf]
    %v630 = vld [vmem:[#allocation7 + $0x68] sm:$0xf]
    %v631 = vld [vmem:[#allocation7 + $0x6c] sm:$0xf]
    %v632 = vld [vmem:[#allocation7 + $0x70] sm:$0xf]
    %v633 = vld [vmem:[#allocation7 + $0x74] sm:$0xf]
    %v634 = vld [vmem:[#allocation7 + $0x78] sm:$0xf]
    %v635 = vld [vmem:[#allocation7 + $0x7c] sm:$0xf]
    %v636 = vld [vmem:[#allocation7 + $0x80] sm:$0xf]
    %v637 = vld [vmem:[#allocation7 + $0x84] sm:$0xf]
    %v638 = vld [vmem:[#allocation7 + $0x88] sm:$0xf]
    %v639 = vld [vmem:[#allocation7 + $0x8c] sm:$0xf]
    %v640 = vld [vmem:[#allocation7 + $0x90] sm:$0xf]
    %v641 = vld [vmem:[#allocation7 + $0x94] sm:$0xf]
    %v642 = vld [vmem:[#allocation7 + $0x98] sm:$0xf]
    %v643 = vld [vmem:[#allocation7 + $0x9c] sm:$0xf]
    %v644 = vld [vmem:[#allocation7 + $0xa0] sm:$0xf]
    %v645 = vld [vmem:[#allocation7 + $0xa4] sm:$0xf]
    %v646 = vld [vmem:[#allocation7 + $0xa8] sm:$0xf]
    %v647 = vld [vmem:[#allocation7 + $0xac] sm:$0xf]
    %v648 = vld [vmem:[#allocation7 + $0xb0] sm:$0xf]
    %v649 = vld [vmem:[#allocation7 + $0xb4] sm:$0xf]
    %v650 = vld [vmem:[#allocation7 + $0xb8] sm:$0xf]
    %v651 = vld [vmem:[#allocation7 + $0xbc] sm:$0xf]
    %v652 = vld [vmem:[#allocation7 + $0xc0] sm:$0xf]
    %v653 = vld [vmem:[#allocation7 + $0xc4] sm:$0xf]
    %v654 = vld [vmem:[#allocation7 + $0xc8] sm:$0xf]
    %v655 = vld [vmem:[#allocation7 + $0xcc] sm:$0xf]
    %v656 = vld [vmem:[#allocation7 + $0xd0] sm:$0xf]
    %v657 = vld [vmem:[#allocation7 + $0xd4] sm:$0xf]
    %v658 = vld [vmem:[#allocation7 + $0xd8] sm:$0xf]
    %v659 = vld [vmem:[#allocation7 + $0xdc] sm:$0xf]
    %v660 = vld [vmem:[#allocation7 + $0xe0] sm:$0xf]
    %v661 = vld [vmem:[#allocation7 + $0xe4] sm:$0xf]
    %v662 = vld [vmem:[#allocation7 + $0xe8] sm:$0xf]
    %v663 = vld [vmem:[#allocation7 + $0xec] sm:$0xf]
    %v664 = vld [vmem:[#allocation7 + $0xf0] sm:$0xf]
    %v665 = vld [vmem:[#allocation7 + $0xf4] sm:$0xf]
    %v666 = vld [vmem:[#allocation7 + $0xf8] sm:$0xf]
    %v667 = vld [vmem:[#allocation7 + $0xfc] sm:$0xf]
    %v668 = vld [vmem:[%s4] sm:$0x1]
    %v670 = vlaneseq
    %v671 = vshrl.u32 %v670, 7
    %v672 = vsub.s32 0, %v671
    %v673 = vrot.slane %v668, %v672
    %v739 = vunpack.c.l.b16 %v604
    %v740 = vunpack.c.l.b16 %v605
    %v741 = vunpack.c.l.b16 %v606
    %v742 = vunpack.c.l.b16 %v607
    %v743 = vunpack.c.l.b16 %v608
    %v744 = vunpack.c.l.b16 %v609
    %v745 = vunpack.c.l.b16 %v610
    %v746 = vunpack.c.l.b16 %v611
    %v747 = vunpack.c.l.b16 %v612
    %v748 = vunpack.c.l.b16 %v613
    %v749 = vunpack.c.l.b16 %v614
    %v750 = vunpack.c.l.b16 %v615
    %v751 = vunpack.c.l.b16 %v616
    %v752 = vunpack.c.l.b16 %v617
    %v753 = vunpack.c.l.b16 %v618
    %v754 = vunpack.c.l.b16 %v619
    %v755 = vunpack.c.l.b16 %v620
    %v756 = vunpack.c.l.b16 %v621
    %v757 = vunpack.c.l.b16 %v622
    %v758 = vunpack.c.l.b16 %v623
    %v759 = vunpack.c.l.b16 %v624
    %v760 = vunpack.c.l.b16 %v625
    %v761 = vunpack.c.l.b16 %v626
    %v762 = vunpack.c.l.b16 %v627
    %v763 = vunpack.c.l.b16 %v628
    %v764 = vunpack.c.l.b16 %v629
    %v765 = vunpack.c.l.b16 %v630
    %v766 = vunpack.c.l.b16 %v631
    %v767 = vunpack.c.l.b16 %v632
    %v768 = vunpack.c.l.b16 %v633
    %v769 = vunpack.c.l.b16 %v634
    %v770 = vunpack.c.l.b16 %v635
    %v771 = vunpack.c.l.b16 %v636
    %v772 = vunpack.c.l.b16 %v637
    %v773 = vunpack.c.l.b16 %v638
    %v774 = vunpack.c.l.b16 %v639
    %v775 = vunpack.c.l.b16 %v640
    %v776 = vunpack.c.l.b16 %v641
    %v777 = vunpack.c.l.b16 %v642
    %v778 = vunpack.c.l.b16 %v643
    %v779 = vunpack.c.l.b16 %v644
    %v780 = vunpack.c.l.b16 %v645
    %v781 = vunpack.c.l.b16 %v646
    %v782 = vunpack.c.l.b16 %v647
    %v783 = vunpack.c.l.b16 %v648
    %v784 = vunpack.c.l.b16 %v649
    %v785 = vunpack.c.l.b16 %v650
    %v786 = vunpack.c.l.b16 %v651
    %v787 = vunpack.c.l.b16 %v652
    %v788 = vunpack.c.l.b16 %v653
    %v789 = vunpack.c.l.b16 %v654
    %v790 = vunpack.c.l.b16 %v655
    %v791 = vunpack.c.l.b16 %v656
    %v792 = vunpack.c.l.b16 %v657
    %v793 = vunpack.c.l.b16 %v658
    %v794 = vunpack.c.l.b16 %v659
    %v795 = vunpack.c.l.b16 %v660
    %v796 = vunpack.c.l.b16 %v661
    %v797 = vunpack.c.l.b16 %v662
    %v798 = vunpack.c.l.b16 %v663
    %v799 = vunpack.c.l.b16 %v664
    %v800 = vunpack.c.l.b16 %v665
    %v801 = vunpack.c.l.b16 %v666
    %v802 = vunpack.c.l.b16 %v667
    %v803 = vpack.c.b16 %v740, %v739
    %v804 = vpack.c.b16 %v742, %v741
    %v805 = vpack.c.b16 %v744, %v743
    %v806 = vpack.c.b16 %v746, %v745
    %v807 = vpack.c.b16 %v748, %v747
    %v808 = vpack.c.b16 %v750, %v749
    %v809 = vpack.c.b16 %v752, %v751
    %v810 = vpack.c.b16 %v754, %v753
    %v811 = vpack.c.b16 %v756, %v755
    %v812 = vpack.c.b16 %v758, %v757
    %v813 = vpack.c.b16 %v760, %v759
    %v814 = vpack.c.b16 %v762, %v761
    %v815 = vpack.c.b16 %v764, %v763
    %v816 = vpack.c.b16 %v766, %v765
    %v817 = vpack.c.b16 %v768, %v767
    %v818 = vpack.c.b16 %v770, %v769
    %v819 = vpack.c.b16 %v772, %v771
    %v820 = vpack.c.b16 %v774, %v773
    %v821 = vpack.c.b16 %v776, %v775
    %v822 = vpack.c.b16 %v778, %v777
    %v823 = vpack.c.b16 %v780, %v779
    %v824 = vpack.c.b16 %v782, %v781
    %v825 = vpack.c.b16 %v784, %v783
    %v826 = vpack.c.b16 %v786, %v785
    %v827 = vpack.c.b16 %v788, %v787
    %v828 = vpack.c.b16 %v790, %v789
    %v829 = vpack.c.b16 %v792, %v791
    %v830 = vpack.c.b16 %v794, %v793
    %v831 = vpack.c.b16 %v796, %v795
    %v832 = vpack.c.b16 %v798, %v797
    %v833 = vpack.c.b16 %v800, %v799
    %v834 = vpack.c.b16 %v802, %v801
    %867 = vmatprep.subr.bf16.mxu0 0
    %868 = vmatpush1.bf16.msra.mxu0 %v803
    %869 = vmatprep.subr.bf16.mxu0 0
    %870 = vmatpush1.bf16.msra.mxu0 %v804
    %871 = vmatprep.subr.bf16.mxu0 0
    %872 = vmatpush1.bf16.msra.mxu0 %v805
    %873 = vmatprep.subr.bf16.mxu0 0
    %874 = vmatpush1.bf16.msra.mxu0 %v806
    %875 = vmatprep.subr.bf16.mxu0 0
    %876 = vmatpush1.bf16.msra.mxu0 %v807
    %877 = vmatprep.subr.bf16.mxu0 0
    %878 = vmatpush1.bf16.msra.mxu0 %v808
    %879 = vmatprep.subr.bf16.mxu0 0
    %880 = vmatpush1.bf16.msra.mxu0 %v809
    %881 = vmatprep.subr.bf16.mxu0 0
    %882 = vmatpush1.bf16.msra.mxu0 %v810
    %883 = vmatprep.subr.bf16.mxu0 0
    %884 = vmatpush1.bf16.msra.mxu0 %v811
    %885 = vmatprep.subr.bf16.mxu0 0
    %886 = vmatpush1.bf16.msra.mxu0 %v812
    %887 = vmatprep.subr.bf16.mxu0 0
    %888 = vmatpush1.bf16.msra.mxu0 %v813
    %889 = vmatprep.subr.bf16.mxu0 0
    %890 = vmatpush1.bf16.msra.mxu0 %v814
    %891 = vmatprep.subr.bf16.mxu0 0
    %892 = vmatpush1.bf16.msra.mxu0 %v815
    %893 = vmatprep.subr.bf16.mxu0 0
    %894 = vmatpush1.bf16.msra.mxu0 %v816
    %895 = vmatprep.subr.bf16.mxu0 0
    %896 = vmatpush1.bf16.msra.mxu0 %v817
    %897 = vmatprep.subr.bf16.mxu0 0
    %898 = vmatpush1.bf16.msra.mxu0 %v818
    %899 = vmatprep.mubr.bf16.mxu0 %v601
    %900 = vmatmul.mubr.bf16.gmra.mrb[0].mxu0 %v600
    %v901 = vpop.f32.mrb[0].mxu0
    %v902 = vadd.f32 %v673, %v901
    %v903 = vpop.f32.mrb[0].mxu0
    %v904 = vpop.f32.mrb[0].mxu0
    %v905 = vpop.f32.mrb[0].mxu0
    %906 = vdwg.mxu0
    %907 = vmatprep.subr.bf16.mxu0 0
    %908 = vmatpush1.bf16.msra.mxu0 %v819
    %909 = vmatprep.subr.bf16.mxu0 0
    %910 = vmatpush1.bf16.msra.mxu0 %v820
    %911 = vmatprep.subr.bf16.mxu0 0
    %912 = vmatpush1.bf16.msra.mxu0 %v821
    %913 = vmatprep.subr.bf16.mxu0 0
    %914 = vmatpush1.bf16.msra.mxu0 %v822
    %915 = vmatprep.subr.bf16.mxu0 0
    %916 = vmatpush1.bf16.msra.mxu0 %v823
    %917 = vmatprep.subr.bf16.mxu0 0
    %918 = vmatpush1.bf16.msra.mxu0 %v824
    %919 = vmatprep.subr.bf16.mxu0 0
    %920 = vmatpush1.bf16.msra.mxu0 %v825
    %921 = vmatprep.subr.bf16.mxu0 0
    %922 = vmatpush1.bf16.msra.mxu0 %v826
    %923 = vmatprep.subr.bf16.mxu0 0
    %924 = vmatpush1.bf16.msra.mxu0 %v827
    %925 = vmatprep.subr.bf16.mxu0 0
    %926 = vmatpush1.bf16.msra.mxu0 %v828
    %927 = vmatprep.subr.bf16.mxu0 0
    %928 = vmatpush1.bf16.msra.mxu0 %v829
    %929 = vmatprep.subr.bf16.mxu0 0
    %930 = vmatpush1.bf16.msra.mxu0 %v830
    %931 = vmatprep.subr.bf16.mxu0 0
    %932 = vmatpush1.bf16.msra.mxu0 %v831
    %933 = vmatprep.subr.bf16.mxu0 0
    %934 = vmatpush1.bf16.msra.mxu0 %v832
    %935 = vmatprep.subr.bf16.mxu0 0
    %936 = vmatpush1.bf16.msra.mxu0 %v833
    %937 = vmatprep.subr.bf16.mxu0 0
    %938 = vmatpush1.bf16.msra.mxu0 %v834
    %939 = vmatprep.mubr.bf16.mxu0 %v603
    %940 = vmatmul.mubr.bf16.gmra.mrb[0].mxu0 %v602
    %v941 = vpop.f32.mrb[0].mxu0
    %v942 = vadd.f32 %v902, %v941
    %v943 = vpop.f32.mrb[0].mxu0
    %v944 = vpop.f32.mrb[0].mxu0
    %v945 = vpop.f32.mrb[0].mxu0
    %946 = vdwg.mxu0
    %v947 = vmax.f32 %v942, 0.0
    %v948 = vpack.c.bf16 %v947, %v947
    %v949 = vld [vmem:[#allocation8] sm:$0xf]
    %v950 = vld [vmem:[#allocation8 + $0x4] sm:$0xf]
    %v951 = vld [vmem:[#allocation8 + $0x8] sm:$0xf]
    %v952 = vld [vmem:[#allocation8 + $0xc] sm:$0xf]
    %v953 = vld [vmem:[#allocation8 + $0x10] sm:$0xf]
    %v954 = vld [vmem:[#allocation8 + $0x14] sm:$0xf]
    %v955 = vld [vmem:[#allocation8 + $0x18] sm:$0xf]
    %v956 = vld [vmem:[#allocation8 + $0x1c] sm:$0xf]
    %v957 = vld [vmem:[#allocation8 + $0x20] sm:$0xf]
    %v958 = vld [vmem:[#allocation8 + $0x24] sm:$0xf]
    %v959 = vld [vmem:[#allocation8 + $0x28] sm:$0xf]
    %v960 = vld [vmem:[#allocation8 + $0x2c] sm:$0xf]
    %v961 = vld [vmem:[#allocation8 + $0x30] sm:$0xf]
    %v962 = vld [vmem:[#allocation8 + $0x34] sm:$0xf]
    %v963 = vld [vmem:[#allocation8 + $0x38] sm:$0xf]
    %v964 = vld [vmem:[#allocation8 + $0x3c] sm:$0xf]
    %v965 = vld [vmem:[%s6] sm:$0x1]
    %v967 = vlaneseq
    %v968 = vshrl.u32 %v967, 7
    %v969 = vsub.s32 0, %v968
    %v970 = vrot.slane %v965, %v969
    %v988 = vunpack.c.l.b16 %v949
    %v989 = vunpack.c.l.b16 %v950
    %v990 = vunpack.c.l.b16 %v951
    %v991 = vunpack.c.l.b16 %v952
    %v992 = vunpack.c.l.b16 %v953
    %v993 = vunpack.c.l.b16 %v954
    %v994 = vunpack.c.l.b16 %v955
    %v995 = vunpack.c.l.b16 %v956
    %v996 = vunpack.c.l.b16 %v957
    %v997 = vunpack.c.l.b16 %v958
    %v998 = vunpack.c.l.b16 %v959
    %v999 = vunpack.c.l.b16 %v960
    %v1000 = vunpack.c.l.b16 %v961
    %v1001 = vunpack.c.l.b16 %v962
    %v1002 = vunpack.c.l.b16 %v963
    %v1003 = vunpack.c.l.b16 %v964
    %v1004 = vpack.c.b16 %v989, %v988
    %v1005 = vpack.c.b16 %v991, %v990
    %v1006 = vpack.c.b16 %v993, %v992
    %v1007 = vpack.c.b16 %v995, %v994
    %v1008 = vpack.c.b16 %v997, %v996
    %v1009 = vpack.c.b16 %v999, %v998
    %v1010 = vpack.c.b16 %v1001, %v1000
    %v1011 = vpack.c.b16 %v1003, %v1002
    %1020 = vmatprep.subr.bf16.mxu0 0
    %1021 = vmatpush1.bf16.msra.mxu0 %v1004
    %1022 = vmatprep.subr.bf16.mxu0 0
    %1023 = vmatpush1.bf16.msra.mxu0 %v1005
    %1024 = vmatprep.subr.bf16.mxu0 0
    %1025 = vmatpush1.bf16.msra.mxu0 %v1006
    %1026 = vmatprep.subr.bf16.mxu0 0
    %1027 = vmatpush1.bf16.msra.mxu0 %v1007
    %1028 = vmatprep.subr.bf16.mxu0 0
    %1029 = vmatpush1.bf16.msra.mxu0 %v1008
    %1030 = vmatprep.subr.bf16.mxu0 0
    %1031 = vmatpush1.bf16.msra.mxu0 %v1009
    %1032 = vmatprep.subr.bf16.mxu0 0
    %1033 = vmatpush1.bf16.msra.mxu0 %v1010
    %1034 = vmatprep.subr.bf16.mxu0 0
    %1035 = vmatpush1.bf16.msra.mxu0 %v1011
    %1036 = vmatprep.subr.bf16.mxu0 0
    %1037 = vmatpush1.bf16.msra.mxu0 0
    %1038 = vmatprep.subr.bf16.mxu0 0
    %1039 = vmatpush1.bf16.msra.mxu0 0
    %1040 = vmatprep.subr.bf16.mxu0 0
    %1041 = vmatpush1.bf16.msra.mxu0 0
    %1042 = vmatprep.subr.bf16.mxu0 0
    %1043 = vmatpush1.bf16.msra.mxu0 0
    %1044 = vmatprep.subr.bf16.mxu0 0
    %1045 = vmatpush1.bf16.msra.mxu0 0
    %1046 = vmatprep.subr.bf16.mxu0 0
    %1047 = vmatpush1.bf16.msra.mxu0 0
    %1048 = vmatprep.subr.bf16.mxu0 0
    %1049 = vmatpush1.bf16.msra.mxu0 0
    %1050 = vmatprep.subr.bf16.mxu0 0
    %1051 = vmatpush1.bf16.msra.mxu0 0
    %1052 = vmatprep.mubr.bf16.mxu0 0
    %1053 = vmatmul.mubr.bf16.gmra.mrb[0].mxu0 %v948
    %v1054 = vpop.f32.mrb[0].mxu0
    %v1055 = vadd.f32 %v970, %v1054
    %v1056 = vpop.f32.mrb[0].mxu0
    %v1057 = vpop.f32.mrb[0].mxu0
    %v1058 = vpop.f32.mrb[0].mxu0
    %1059 = vdwg.mxu0
    %v1060 = vmax.f32 %v1055, 0.0
    %v1061 = vpack.c.bf16 %v1060, %v1060
    %v1062 = vld [vmem:[#allocation10] sm:$0xf]
    %v1063 = vld [vmem:[#allocation10 + $0x4] sm:$0xf]
    %v1064 = vld [vmem:[#allocation10 + $0x8] sm:$0xf]
    %v1065 = vld [vmem:[#allocation10 + $0xc] sm:$0xf]
    %v1066 = vld [vmem:[#allocation10 + $0x10] sm:$0xf]
    %v1067 = vld [vmem:[#allocation10 + $0x14] sm:$0xf]
    %v1068 = vld [vmem:[#allocation10 + $0x18] sm:$0xf]
    %v1069 = vld [vmem:[#allocation10 + $0x1c] sm:$0xf]
    %v1070 = vld [vmem:[#allocation10 + $0x20] sm:$0xf]
    %v1071 = vld [vmem:[#allocation10 + $0x24] sm:$0xf]
    %v1072 = vld [vmem:[#allocation10 + $0x28] sm:$0xf]
    %v1073 = vld [vmem:[#allocation10 + $0x2c] sm:$0xf]
    %v1074 = vld [vmem:[#allocation10 + $0x30] sm:$0xf]
    %v1075 = vld [vmem:[#allocation10 + $0x34] sm:$0xf]
    %v1076 = vld [vmem:[#allocation10 + $0x38] sm:$0xf]
    %v1077 = vld [vmem:[#allocation10 + $0x3c] sm:$0xf]
    %v1078 = vld [vmem:[%s8] sm:$0x1]
    %v1080 = vlaneseq
    %v1081 = vshrl.u32 %v1080, 7
    %v1082 = vsub.s32 0, %v1081
    %v1083 = vrot.slane %v1078, %v1082
    %v1101 = vunpack.c.l.b16 %v1062
    %v1102 = vunpack.c.l.b16 %v1063
    %v1103 = vunpack.c.l.b16 %v1064
    %v1104 = vunpack.c.l.b16 %v1065
    %v1105 = vunpack.c.l.b16 %v1066
    %v1106 = vunpack.c.l.b16 %v1067
    %v1107 = vunpack.c.l.b16 %v1068
    %v1108 = vunpack.c.l.b16 %v1069
    %v1109 = vunpack.c.l.b16 %v1070
    %v1110 = vunpack.c.l.b16 %v1071
    %v1111 = vunpack.c.l.b16 %v1072
    %v1112 = vunpack.c.l.b16 %v1073
    %v1113 = vunpack.c.l.b16 %v1074
    %v1114 = vunpack.c.l.b16 %v1075
    %v1115 = vunpack.c.l.b16 %v1076
    %v1116 = vunpack.c.l.b16 %v1077
    %v1117 = vpack.c.b16 %v1102, %v1101
    %v1118 = vpack.c.b16 %v1104, %v1103
    %v1119 = vpack.c.b16 %v1106, %v1105
    %v1120 = vpack.c.b16 %v1108, %v1107
    %v1121 = vpack.c.b16 %v1110, %v1109
    %v1122 = vpack.c.b16 %v1112, %v1111
    %v1123 = vpack.c.b16 %v1114, %v1113
    %v1124 = vpack.c.b16 %v1116, %v1115
    %1133 = vmatprep.subr.bf16.mxu0 0
    %1134 = vmatpush1.bf16.msra.mxu0 %v1117
    %1135 = vmatprep.subr.bf16.mxu0 0
    %1136 = vmatpush1.bf16.msra.mxu0 %v1118
    %1137 = vmatprep.subr.bf16.mxu0 0
    %1138 = vmatpush1.bf16.msra.mxu0 %v1119
    %1139 = vmatprep.subr.bf16.mxu0 0
    %1140 = vmatpush1.bf16.msra.mxu0 %v1120
    %1141 = vmatprep.subr.bf16.mxu0 0
    %1142 = vmatpush1.bf16.msra.mxu0 %v1121
    %1143 = vmatprep.subr.bf16.mxu0 0
    %1144 = vmatpush1.bf16.msra.mxu0 %v1122
    %1145 = vmatprep.subr.bf16.mxu0 0
    %1146 = vmatpush1.bf16.msra.mxu0 %v1123
    %1147 = vmatprep.subr.bf16.mxu0 0
    %1148 = vmatpush1.bf16.msra.mxu0 %v1124
    %1149 = vmatprep.subr.bf16.mxu0 0
    %1150 = vmatpush1.bf16.msra.mxu0 0
    %1151 = vmatprep.subr.bf16.mxu0 0
    %1152 = vmatpush1.bf16.msra.mxu0 0
    %1153 = vmatprep.subr.bf16.mxu0 0
    %1154 = vmatpush1.bf16.msra.mxu0 0
    %1155 = vmatprep.subr.bf16.mxu0 0
    %1156 = vmatpush1.bf16.msra.mxu0 0
    %1157 = vmatprep.subr.bf16.mxu0 0
    %1158 = vmatpush1.bf16.msra.mxu0 0
    %1159 = vmatprep.subr.bf16.mxu0 0
    %1160 = vmatpush1.bf16.msra.mxu0 0
    %1161 = vmatprep.subr.bf16.mxu0 0
    %1162 = vmatpush1.bf16.msra.mxu0 0
    %1163 = vmatprep.subr.bf16.mxu0 0
    %1164 = vmatpush1.bf16.msra.mxu0 0
    %1165 = vmatprep.mubr.bf16.mxu0 0
    %1166 = vmatmul.mubr.bf16.gmra.mrb[0].mxu0 %v1061
    %v1167 = vpop.f32.mrb[0].mxu0
    %v1168 = vadd.f32 %v1083, %v1167
    %v1169 = vpop.f32.mrb[0].mxu0
    %v1170 = vpop.f32.mrb[0].mxu0
    %v1171 = vpop.f32.mrb[0].mxu0
    %1172 = vdwg.mxu0
    %1173 = vmax.xlane.f32.xlu0 %v1168
    %v1174 = vpop.xlane.xlu0 %1173
    %v1175 = vsub.f32 %v1168, %v1174
    %v1176 = vmul.f32 %v1175, 1.442695
    %v1177 = vpow.pop %v1176
    %1178 = vadd.xlane.f32.xlu0 %v1177
    %v1179 = vpop.xlane.xlu0 %1178
    %v1180 = vlog2.pop %v1179
    %v1181 = vmul.f32 %v1180, 0.6931472
    %v1182 = vsub.f32 %v1175, %v1181
    %1183 = vst [vmem:[#allocation11] sm:$0xff] %v1182
    // Predicated region
    $region58: #{tpu_custom_call.1} parent=1 // pred_check
      _
    $region59: #{tpu_custom_call.1} parent=1 // pred_check_branch
      %1185 = sbr.rel (0) target = $region61
    $region60: #{tpu_custom_call.1} parent=1 // pred_region
      %s1187 = ssub.s32 128, 128
      %1188 = vsyncadd [#allocation4], %s1187
      %s1190 = sshll.u32 [#allocation11], 4
      %s1191 = int_to_ptr.vmem [resolvable:$true] %s1190
      %1193 = dma.vmem_to_hbm [thread:$0]  %s1191, 128, %s9, [#allocation4]
    $region61: #{tpu_custom_call.1} parent=1 // pred_fallthru
      _
    // Predicated region
    $region62: #{tpu_custom_call.1} parent=1 // pred_check
      _
    $region63: #{tpu_custom_call.1} parent=1 // pred_check_branch
      %1195 = sbr.rel (0) target = $region65
    $region64: #{tpu_custom_call.1} parent=1 // pred_region
      %1196 = dma.done [#allocation4], 128
    $region65: #{tpu_custom_call.1} parent=1 // pred_fallthru
      _
    %1197 = vsyncpa [#allocation3], 1
    %1198 = vsyncpa [#allocation6], 1
    %1199 = vsyncpa [#allocation9], 1
    %1200 = vsyncpa [#allocation4], 1

</llo_original>
